<compile_context>
chip_gen: v6e
topology: v6e:2x2x1
jax: 0.10.0
libtpu: 0.0.40
codegen_flags: <defaults>
</compile_context>

<pallas_src>
import jax
import jax.numpy as jnp
from jax import lax
from jax.experimental import pallas as pl
from jax.experimental.pallas import tpu as pltpu


def qnet_kernel(x_ref, w1_ref, b1_ref, w2_ref, b2_ref, w3_ref, b3_ref, o_ref):
    """Fused MLP forward in batch-on-lane layout.

    x_ref : (TILE_B, 4)   input rows (natural HBM layout)
    wN    : (out, in)     PyTorch layout, no pre-transpose needed
    bN    : (out, 1)      column bias, broadcasts along lanes
    o_ref : (2, TILE_B)   lane-dense output block
    """
    x = x_ref[...].astype(jnp.float32)  # (TILE_B, 4)

    # h1 = W1 @ x^T computed by contracting x's feature axis as the RHS:
    # result is (16, TILE_B) -> features on sublanes, batch on lanes.
    h1 = lax.dot_general(
        w1_ref[...], x,
        dimension_numbers=(((1,), (1,)), ((), ())),
        preferred_element_type=jnp.float32,
    )
    h1 = jnp.maximum(h1 + b1_ref[...], 0.0)                       # (16, TILE_B)

    h2 = jnp.dot(w2_ref[...], h1, preferred_element_type=jnp.float32)
    h2 = jnp.maximum(h2 + b2_ref[...], 0.0)                       # (8, TILE_B)

    h3 = jnp.dot(w3_ref[...], h2, preferred_element_type=jnp.float32)
    h3 = jnp.maximum(h3 + b3_ref[...], 0.0)                       # (2, TILE_B)

    o_ref[...] = h3.astype(o_ref.dtype)


def qnet_forward(state, params, tile_b=2048):
    """state: (B, 4) f32/bf16. params: PyTorch-layout dict w1,b1,w2,b2,w3,b3."""
    B, in_dim = state.shape
    assert in_dim == 4

    w1, b1 = params["w1"], params["b1"].reshape(-1, 1)   # (16,4), (16,1)
    w2, b2 = params["w2"], params["b2"].reshape(-1, 1)   # (8,16), (8,1)
    w3, b3 = params["w3"], params["b3"].reshape(-1, 1)   # (2,8),  (2,1)

    # Batch tile: large (multiple of 256 -> matches MXU M on v6e/v7x) when the
    # batch is big; otherwise a single tile rounded up to a multiple of 128 so
    # the lane-dense output block stays (8,128)-legal.
    if B >= tile_b:
        tile = tile_b
    else:
        tile = max(128, ((B + 127) // 128) * 128)
    b_pad = ((B + tile - 1) // tile) * tile
    x = state if b_pad == B else jnp.pad(state, ((0, b_pad - B), (0, 0)))

    grid = (b_pad // tile,)
    resident = lambda shape: pl.BlockSpec(shape, lambda i: (0, 0))  # VMEM-resident

    out_t = pl.pallas_call(
        qnet_kernel,
        out_shape=jax.ShapeDtypeStruct((2, b_pad), state.dtype),
        grid=grid,
        in_specs=[
            pl.BlockSpec((tile, 4), lambda i: (i, 0)),   # batch-tiled input
            resident(w1.shape), resident(b1.shape),
            resident(w2.shape), resident(b2.shape),
            resident(w3.shape), resident(b3.shape),
        ],
        out_specs=pl.BlockSpec((2, tile), lambda i: (0, i)),
        compiler_params=pltpu.CompilerParams(
            dimension_semantics=("parallel",),
        ),
    )(x, w1, b1, w2, b2, w3, b3)

    # Drop padded columns, return PyTorch-convention (B, 2).
    return out_t[:, :B].T


def init_params(key):
    """Deterministic init mimicking PyTorch Linear (uniform +/- 1/sqrt(fan_in))."""
    ks = jax.random.split(key, 6)

    def linear(kw, kb, fan_in, fan_out):
        bound = 1.0 / jnp.sqrt(fan_in)
        w = jax.random.uniform(kw, (fan_out, fan_in), jnp.float32, -bound, bound)
        b = jax.random.uniform(kb, (fan_out,), jnp.float32, -bound, bound)
        return w, b

    w1, b1 = linear(ks[0], ks[1], 4, 16)
    w2, b2 = linear(ks[2], ks[3], 16, 8)
    w3, b3 = linear(ks[4], ks[5], 8, 2)
    return {"w1": w1, "b1": b1, "w2": w2, "b2": b2, "w3": w3, "b3": b3}


def qnet_reference(state, p):
    h = jnp.maximum(state @ p["w1"].T + p["b1"], 0.0)
    h = jnp.maximum(h @ p["w2"].T + p["b2"], 0.0)
    return jnp.maximum(h @ p["w3"].T + p["b3"], 0.0)


if __name__ == "__main__":
    key = jax.random.PRNGKey(0)
    k_param, k_x1, k_x2 = jax.random.split(key, 3)

    params = init_params(k_param)

    # Small shape consistent with the module: batch=2, state_dim=4.
    state_small = jax.random.normal(k_x1, (2, 4), jnp.float32)
    out_small = jax.block_until_ready(qnet_forward(state_small, params))
    ref_small = qnet_reference(state_small, params)
    assert out_small.shape == (2, 2)
    assert jnp.allclose(out_small, ref_small, atol=1e-5, rtol=1e-5), (out_small, ref_small)

    # Larger, non-multiple batch exercises the multi-tile grid + padding path.
    state_big = jax.random.normal(k_x2, (4096 + 13, 4), jnp.float32)
    out_big = jax.block_until_ready(qnet_forward(state_big, params))
    ref_big = qnet_reference(state_big, params)
    assert out_big.shape == (4096 + 13, 2)
    assert jnp.allclose(out_big, ref_big, atol=1e-4, rtol=1e-4)

    print("KERNEL_OK")
</pallas_src>

<mosaic_0001>
module attributes {stable_mosaic.version = 11 : i64} {
  func.func @qnet_kernel(%arg0: i32, %arg1: memref<128x4xf32, #tpu.memory_space<vmem>>, %arg2: memref<16x4xf32, #tpu.memory_space<vmem>>, %arg3: memref<16x1xf32, #tpu.memory_space<vmem>>, %arg4: memref<8x16xf32, #tpu.memory_space<vmem>>, %arg5: memref<8x1xf32, #tpu.memory_space<vmem>>, %arg6: memref<2x8xf32, #tpu.memory_space<vmem>>, %arg7: memref<2x1xf32, #tpu.memory_space<vmem>>, %arg8: memref<2x128xf32, #tpu.memory_space<vmem>>) attributes {dimension_semantics = [#tpu.dimension_semantics<parallel>], iteration_bounds = array<i64: 1>, scalar_prefetch = 0 : i64, scratch_operands = 0 : i64, tpu.core_type = #tpu.core_type<tc>, window_params = [{transform_indices = @transform_0, window_bounds = array<i64: 128, 4>}, {pipeline_mode = #tpu.pipeline_mode<synchronous>, transform_indices = @transform_1, window_bounds = array<i64: 16, 4>}, {pipeline_mode = #tpu.pipeline_mode<synchronous>, transform_indices = @transform_2, window_bounds = array<i64: 16, 1>}, {pipeline_mode = #tpu.pipeline_mode<synchronous>, transform_indices = @transform_3, window_bounds = array<i64: 8, 16>}, {pipeline_mode = #tpu.pipeline_mode<synchronous>, transform_indices = @transform_4, window_bounds = array<i64: 8, 1>}, {pipeline_mode = #tpu.pipeline_mode<synchronous>, transform_indices = @transform_5, window_bounds = array<i64: 2, 8>}, {pipeline_mode = #tpu.pipeline_mode<synchronous>, transform_indices = @transform_6, window_bounds = array<i64: 2, 1>}, {transform_indices = @transform_7, window_bounds = array<i64: 2, 128>}]} {
    %c0 = arith.constant 0 : index
    %c0_0 = arith.constant 0 : index
    %0 = vector.load %arg1[%c0, %c0_0] : memref<128x4xf32, #tpu.memory_space<vmem>>, vector<128x4xf32>
    %c0_1 = arith.constant 0 : index
    %c0_2 = arith.constant 0 : index
    %1 = vector.load %arg2[%c0_1, %c0_2] : memref<16x4xf32, #tpu.memory_space<vmem>>, vector<16x4xf32>
    %cst = arith.constant dense<0.000000e+00> : vector<16x128xf32>
    %2 = tpu.matmul %1, %0, %cst {dimension_numbers = #tpu.dot_dimension_numbers<[1], [1], [0], [0], [0, 0, 1, 0], [], []>} : vector<16x4xf32>, vector<128x4xf32>, vector<16x128xf32> -> vector<16x128xf32>
    %c0_3 = arith.constant 0 : index
    %c0_4 = arith.constant 0 : index
    %3 = vector.load %arg3[%c0_3, %c0_4] : memref<16x1xf32, #tpu.memory_space<vmem>>, vector<16x1xf32>
    %4 = vector.broadcast %3 : vector<16x1xf32> to vector<16x128xf32>
    %5 = arith.addf %2, %4 : vector<16x128xf32>
    %cst_5 = arith.constant 0.000000e+00 : f32
    %6 = vector.broadcast %cst_5 : f32 to vector<16x128xf32>
    %7 = arith.maximumf %5, %6 : vector<16x128xf32>
    %c0_6 = arith.constant 0 : index
    %c0_7 = arith.constant 0 : index
    %8 = vector.load %arg4[%c0_6, %c0_7] : memref<8x16xf32, #tpu.memory_space<vmem>>, vector<8x16xf32>
    %cst_8 = arith.constant dense<0.000000e+00> : vector<8x128xf32>
    %9 = tpu.matmul %8, %7, %cst_8 {dimension_numbers = #tpu.dot_dimension_numbers<[1], [0], [0], [1], [0, 0, 1, 1], [], []>} : vector<8x16xf32>, vector<16x128xf32>, vector<8x128xf32> -> vector<8x128xf32>
    %c0_9 = arith.constant 0 : index
    %c0_10 = arith.constant 0 : index
    %10 = vector.load %arg5[%c0_9, %c0_10] : memref<8x1xf32, #tpu.memory_space<vmem>>, vector<8x1xf32>
    %11 = vector.broadcast %10 : vector<8x1xf32> to vector<8x128xf32>
    %12 = arith.addf %9, %11 : vector<8x128xf32>
    %cst_11 = arith.constant 0.000000e+00 : f32
    %13 = vector.broadcast %cst_11 : f32 to vector<8x128xf32>
    %14 = arith.maximumf %12, %13 : vector<8x128xf32>
    %c0_12 = arith.constant 0 : index
    %c0_13 = arith.constant 0 : index
    %15 = vector.load %arg6[%c0_12, %c0_13] : memref<2x8xf32, #tpu.memory_space<vmem>>, vector<2x8xf32>
    %cst_14 = arith.constant dense<0.000000e+00> : vector<2x128xf32>
    %16 = tpu.matmul %15, %14, %cst_14 {dimension_numbers = #tpu.dot_dimension_numbers<[1], [0], [0], [1], [0, 0, 1, 1], [], []>} : vector<2x8xf32>, vector<8x128xf32>, vector<2x128xf32> -> vector<2x128xf32>
    %c0_15 = arith.constant 0 : index
    %c0_16 = arith.constant 0 : index
    %17 = vector.load %arg7[%c0_15, %c0_16] : memref<2x1xf32, #tpu.memory_space<vmem>>, vector<2x1xf32>
    %18 = vector.broadcast %17 : vector<2x1xf32> to vector<2x128xf32>
    %19 = arith.addf %16, %18 : vector<2x128xf32>
    %cst_17 = arith.constant 0.000000e+00 : f32
    %20 = vector.broadcast %cst_17 : f32 to vector<2x128xf32>
    %21 = arith.maximumf %19, %20 : vector<2x128xf32>
    %c0_18 = arith.constant 0 : index
    %c0_19 = arith.constant 0 : index
    %22 = vector.load %arg8[%c0_18, %c0_19] : memref<2x128xf32, #tpu.memory_space<vmem>>, vector<2x128xf32>
    tpu.vector_store %arg8[%c0_18, %c0_19], %21 {strides = array<i32>} : memref<2x128xf32, #tpu.memory_space<vmem>>, vector<2x128xf32>,
    return
  }
  func.func @transform_0(%arg0: i32) -> (i32, i32) {
    %c0_i32 = arith.constant 0 : i32
    %c0_i32_0 = arith.constant 0 : i32
    return %arg0, %c0_i32 : i32, i32
  }
  func.func @transform_1(%arg0: i32) -> (i32, i32) {
    %c0_i32 = arith.constant 0 : i32
    %c0_i32_0 = arith.constant 0 : i32
    %c0_i32_1 = arith.constant 0 : i32
    return %c0_i32, %c0_i32_0 : i32, i32
  }
  func.func @transform_2(%arg0: i32) -> (i32, i32) {
    %c0_i32 = arith.constant 0 : i32
    %c0_i32_0 = arith.constant 0 : i32
    %c0_i32_1 = arith.constant 0 : i32
    return %c0_i32, %c0_i32_0 : i32, i32
  }
  func.func @transform_3(%arg0: i32) -> (i32, i32) {
    %c0_i32 = arith.constant 0 : i32
    %c0_i32_0 = arith.constant 0 : i32
    %c0_i32_1 = arith.constant 0 : i32
    return %c0_i32, %c0_i32_0 : i32, i32
  }
  func.func @transform_4(%arg0: i32) -> (i32, i32) {
    %c0_i32 = arith.constant 0 : i32
    %c0_i32_0 = arith.constant 0 : i32
    %c0_i32_1 = arith.constant 0 : i32
    return %c0_i32, %c0_i32_0 : i32, i32
  }
  func.func @transform_5(%arg0: i32) -> (i32, i32) {
    %c0_i32 = arith.constant 0 : i32
    %c0_i32_0 = arith.constant 0 : i32
    %c0_i32_1 = arith.constant 0 : i32
    return %c0_i32, %c0_i32_0 : i32, i32
  }
  func.func @transform_6(%arg0: i32) -> (i32, i32) {
    %c0_i32 = arith.constant 0 : i32
    %c0_i32_0 = arith.constant 0 : i32
    %c0_i32_1 = arith.constant 0 : i32
    return %c0_i32, %c0_i32_0 : i32, i32
  }
  func.func @transform_7(%arg0: i32) -> (i32, i32) {
    %c0_i32 = arith.constant 0 : i32
    %c0_i32_0 = arith.constant 0 : i32
    return %c0_i32, %arg0 : i32, i32
  }
}

</mosaic_0001>

<llo_original>
// kernel: tpu_custom_call.1
$region0: #{tpu_custom_call.1}
  #allocation0 [shape = 'u32[]', space=smem, size = 0x4, offset = 0x4, fixed_abs, tag = 'smem constant byte address 0x4 - core index']
  #allocation1 [shape = 'u32[144,128]{1,0:T(1,128)}', space=vmem, size = 0x12000, scoped, tag = 'internal scratch']
  %s0 = inlined_call_operand.vmem [shape: f32[128,4], index: 0, kind: input, shape index: {}]
  %s1 = inlined_call_operand.vmem [shape: f32[16,4], index: 1, kind: input, shape index: {}]
  %s2 = inlined_call_operand.vmem [shape: f32[16,1], index: 2, kind: input, shape index: {}]
  %s3 = inlined_call_operand.vmem [shape: f32[8,16], index: 3, kind: input, shape index: {}]
  %s4 = inlined_call_operand.vmem [shape: f32[8,1], index: 4, kind: input, shape index: {}]
  %s5 = inlined_call_operand.vmem [shape: f32[2,8], index: 5, kind: input, shape index: {}]
  %s6 = inlined_call_operand.vmem [shape: f32[2,1], index: 6, kind: input, shape index: {}]
  %s7 = inlined_call_operand.hbm [shape: f32[2,128], index: 7, kind: output, shape index: {}]
  %s8 = sld [smem:[#allocation0]]
  $region38: #{tpu_custom_call.1} parent=0
    _
  %s10 = ssub.s32 1, %s8
  %s11 = scalar_select 0, %s10, %s8
  $region1: #{tpu_custom_call.1} parent=0
    #allocation2 [shape = 'u8[1024]{0}', space=vmem, size = 0x400, scoped, tag = 'output window, operand 0, single buffered']
    #allocation3 [shape = 's32[1]{0}', space=sflag, size = 0x4, scoped, tag = 'scoped memory for tpu_custom_call.1']
    %12 = vsyncpa [#allocation3], 0
    // Predicated region
    $region2: #{tpu_custom_call.1} parent=1 // pred_check
      _
    $region3: #{tpu_custom_call.1} parent=1 // pred_check_branch
      %14 = sbr.rel (0) target = $region5
    $region4: #{tpu_custom_call.1} parent=1 // pred_region
      _
    $region5: #{tpu_custom_call.1} parent=1 // pred_fallthru
      _
    // Predicated region
    $region6: #{tpu_custom_call.1} parent=1 // pred_check
      _
    $region7: #{tpu_custom_call.1} parent=1 // pred_check_branch
      %16 = sbr.rel (0) target = $region9
    $region8: #{tpu_custom_call.1} parent=1 // pred_region
      _
    $region9: #{tpu_custom_call.1} parent=1 // pred_fallthru
      _
    // Predicated region
    $region10: #{tpu_custom_call.1} parent=1 // pred_check
      _
    $region11: #{tpu_custom_call.1} parent=1 // pred_check_branch
      %18 = sbr.rel (0) target = $region13
    $region12: #{tpu_custom_call.1} parent=1 // pred_region
      _
    $region13: #{tpu_custom_call.1} parent=1 // pred_fallthru
      _
    // Predicated region
    $region14: #{tpu_custom_call.1} parent=1 // pred_check
      _
    $region15: #{tpu_custom_call.1} parent=1 // pred_check_branch
      %20 = sbr.rel (0) target = $region17
    $region16: #{tpu_custom_call.1} parent=1 // pred_region
      _
    $region17: #{tpu_custom_call.1} parent=1 // pred_fallthru
      _
    // Predicated region
    $region18: #{tpu_custom_call.1} parent=1 // pred_check
      _
    $region19: #{tpu_custom_call.1} parent=1 // pred_check_branch
      %22 = sbr.rel (0) target = $region21
    $region20: #{tpu_custom_call.1} parent=1 // pred_region
      _
    $region21: #{tpu_custom_call.1} parent=1 // pred_fallthru
      _
    // Predicated region
    $region22: #{tpu_custom_call.1} parent=1 // pred_check
      _
    $region23: #{tpu_custom_call.1} parent=1 // pred_check_branch
      %24 = sbr.rel (0) target = $region25
    $region24: #{tpu_custom_call.1} parent=1 // pred_region
      _
    $region25: #{tpu_custom_call.1} parent=1 // pred_fallthru
      _
    // Predicated region
    $region26: #{tpu_custom_call.1} parent=1 // pred_check
      _
    $region27: #{tpu_custom_call.1} parent=1 // pred_check_branch
      %26 = sbr.rel (0) target = $region29
    $region28: #{tpu_custom_call.1} parent=1 // pred_region
      _
    $region29: #{tpu_custom_call.1} parent=1 // pred_fallthru
      _
    %v27 = vld [vmem:[%s0] sm:$0xff]
    %v28 = vld [vmem:[%s0 + $0x8] sm:$0xff]
    %v29 = vld [vmem:[%s0 + $0x10] sm:$0xff]
    %v30 = vld [vmem:[%s0 + $0x18] sm:$0xff]
    %v31 = vld [vmem:[%s0 + $0x20] sm:$0xff]
    %v32 = vld [vmem:[%s0 + $0x28] sm:$0xff]
    %v33 = vld [vmem:[%s0 + $0x30] sm:$0xff]
    %v34 = vld [vmem:[%s0 + $0x38] sm:$0xff]
    %v35 = vld [vmem:[%s0 + $0x40] sm:$0xff]
    %v36 = vld [vmem:[%s0 + $0x48] sm:$0xff]
    %v37 = vld [vmem:[%s0 + $0x50] sm:$0xff]
    %v38 = vld [vmem:[%s0 + $0x58] sm:$0xff]
    %v39 = vld [vmem:[%s0 + $0x60] sm:$0xff]
    %v40 = vld [vmem:[%s0 + $0x68] sm:$0xff]
    %v41 = vld [vmem:[%s0 + $0x70] sm:$0xff]
    %v42 = vld [vmem:[%s0 + $0x78] sm:$0xff]
    %v43 = vld [vmem:[%s1] sm:$0xff]
    %v44 = vld [vmem:[%s1 + $0x8] sm:$0xff]
    %v45 = vld [vmem:[%s2] sm:$0xff]
    %v46 = vld [vmem:[%s2 + $0x8] sm:$0xff]
    %48 = vset.pattern.permute.xlu0 0
    %49 = vperm.xlu0 %48, %v45
    %v50 = vpop.permute.xlu0 %49
    %53 = vset.pattern.permute.xlu0 0
    %54 = vperm.xlu0 %53, %v46
    %v55 = vpop.permute.xlu0 %54
    %vm57 = vcmask 31744
    %v59 = vsel %vm57, %v43, 0
    %v62 = vsel %vm57, %v44, 0
    %v65 = vsel %vm57, %v27, 0
    %v68 = vsel %vm57, %v28, 0
    %v71 = vsel %vm57, %v29, 0
    %v74 = vsel %vm57, %v30, 0
    %v77 = vsel %vm57, %v31, 0
    %v80 = vsel %vm57, %v32, 0
    %v83 = vsel %vm57, %v33, 0
    %v86 = vsel %vm57, %v34, 0
    %v89 = vsel %vm57, %v35, 0
    %v92 = vsel %vm57, %v36, 0
    %v95 = vsel %vm57, %v37, 0
    %v98 = vsel %vm57, %v38, 0
    %v101 = vsel %vm57, %v39, 0
    %v104 = vsel %vm57, %v40, 0
    %v107 = vsel %vm57, %v41, 0
    %v110 = vsel %vm57, %v42, 0
    %112 = vmatprep.subr.mxu0 0.0
    %113 = vmatpush1.xpose.msra.mxu0 %v110
    %114 = vmatprep.subr.mxu0 0.0
    %115 = vmatpush1.xpose.msra.mxu0 %v107
    %116 = vmatprep.subr.mxu0 0.0
    %117 = vmatpush1.xpose.msra.mxu0 %v104
    %118 = vmatprep.subr.mxu0 0.0
    %119 = vmatpush1.xpose.msra.mxu0 %v101
    %120 = vmatprep.subr.mxu0 0.0
    %121 = vmatpush1.xpose.msra.mxu0 %v98
    %122 = vmatprep.subr.mxu0 0.0
    %123 = vmatpush1.xpose.msra.mxu0 %v95
    %124 = vmatprep.subr.mxu0 0.0
    %125 = vmatpush1.xpose.msra.mxu0 %v92
    %126 = vmatprep.subr.mxu0 0.0
    %127 = vmatpush1.xpose.msra.mxu0 %v89
    %128 = vmatprep.subr.mxu0 0.0
    %129 = vmatpush1.xpose.msra.mxu0 %v86
    %130 = vmatprep.subr.mxu0 0.0
    %131 = vmatpush1.xpose.msra.mxu0 %v83
    %132 = vmatprep.subr.mxu0 0.0
    %133 = vmatpush1.xpose.msra.mxu0 %v80
    %134 = vmatprep.subr.mxu0 0.0
    %135 = vmatpush1.xpose.msra.mxu0 %v77
    %136 = vmatprep.subr.mxu0 0.0
    %137 = vmatpush1.xpose.msra.mxu0 %v74
    %138 = vmatprep.subr.mxu0 0.0
    %139 = vmatpush1.xpose.msra.mxu0 %v71
    %140 = vmatprep.subr.mxu0 0.0
    %141 = vmatpush1.xpose.msra.mxu0 %v68
    %142 = vmatprep.subr.mxu0 0.0
    %143 = vmatpush1.xpose.msra.mxu0 %v65
    %144 = vmatprep.subr.mxu0 0.0
    %145 = vmatpush2.xpose.msra.mxu0 0.0
    %146 = vmatprep.subr.mxu0 0.0
    %147 = vmatpush2.xpose.msra.mxu0 0.0
    %148 = vmatprep.subr.mxu0 0.0
    %149 = vmatpush2.xpose.msra.mxu0 0.0
    %150 = vmatprep.subr.mxu0 0.0
    %151 = vmatpush2.xpose.msra.mxu0 0.0
    %152 = vmatprep.subr.mxu0 0.0
    %153 = vmatpush2.xpose.msra.mxu0 0.0
    %154 = vmatprep.subr.mxu0 0.0
    %155 = vmatpush2.xpose.msra.mxu0 0.0
    %156 = vmatprep.subr.mxu0 0.0
    %157 = vmatpush2.xpose.msra.mxu0 0.0
    %158 = vmatprep.subr.mxu0 0.0
    %159 = vmatpush2.xpose.msra.mxu0 0.0
    %160 = vmatprep.subr.mxu0 0.0
    %161 = vmatpush2.xpose.msra.mxu0 0.0
    %162 = vmatprep.subr.mxu0 0.0
    %163 = vmatpush2.xpose.msra.mxu0 0.0
    %164 = vmatprep.subr.mxu0 0.0
    %165 = vmatpush2.xpose.msra.mxu0 0.0
    %166 = vmatprep.subr.mxu0 0.0
    %167 = vmatpush2.xpose.msra.mxu0 0.0
    %168 = vmatprep.subr.mxu0 0.0
    %169 = vmatpush2.xpose.msra.mxu0 0.0
    %170 = vmatprep.subr.mxu0 0.0
    %171 = vmatpush2.xpose.msra.mxu0 0.0
    %172 = vmatprep.subr.mxu0 0.0
    %173 = vmatpush2.xpose.msra.mxu0 0.0
    %174 = vmatprep.subr.mxu0 0.0
    %175 = vmatpush2.xpose.msra.mxu0 0.0
    %176 = vmatprep.mubr.f32.mxu0 0.0
    %177 = vmatmul.mubr.f32.gmra.mxu0 %v59
    %v178 = vpop.f32.mrf.mxu0
    %v179 = vadd.f32 %v50, %v178
    %v180 = vpop.f32.mrf.mxu0
    %181 = vmatprep.mubr.f32.mxu0 0.0
    %182 = vmatmul.mubr.f32.gmra.mxu0 %v62
    %v183 = vpop.f32.mrf.mxu0
    %v184 = vadd.f32 %v55, %v183
    %v185 = vpop.f32.mrf.mxu0
    %186 = vdwg.mxu0
    %v187 = vmax.f32 %v179, 0.0
    %v188 = vmax.f32 %v184, 0.0
    %v189 = vld [vmem:[%s3] sm:$0xff]
    %v190 = vld [vmem:[%s4] sm:$0xff]
    %192 = vset.pattern.permute.xlu0 0
    %193 = vperm.xlu0 %192, %v190
    %v194 = vpop.permute.xlu0 %193
    %vm196 = vcmask 130048
    %v198 = vsel %vm196, %v189, 0
    %200 = vmatprep.subr.mxu0 0.0
    %201 = vmatpush1.msra.mxu0 0.0
    %202 = vmatprep.subr.mxu0 0.0
    %203 = vmatpush1.msra.mxu0 0.0
    %204 = vmatprep.subr.mxu0 0.0
    %205 = vmatpush1.msra.mxu0 0.0
    %206 = vmatprep.subr.mxu0 0.0
    %207 = vmatpush1.msra.mxu0 0.0
    %208 = vmatprep.subr.mxu0 0.0
    %209 = vmatpush1.msra.mxu0 0.0
    %210 = vmatprep.subr.mxu0 0.0
    %211 = vmatpush1.msra.mxu0 0.0
    %212 = vmatprep.subr.mxu0 0.0
    %213 = vmatpush1.msra.mxu0 0.0
    %214 = vmatprep.subr.mxu0 0.0
    %215 = vmatpush1.msra.mxu0 0.0
    %216 = vmatprep.subr.mxu0 0.0
    %217 = vmatpush1.msra.mxu0 0.0
    %218 = vmatprep.subr.mxu0 0.0
    %219 = vmatpush1.msra.mxu0 0.0
    %220 = vmatprep.subr.mxu0 0.0
    %221 = vmatpush1.msra.mxu0 0.0
    %222 = vmatprep.subr.mxu0 0.0
    %223 = vmatpush1.msra.mxu0 0.0
    %224 = vmatprep.subr.mxu0 0.0
    %225 = vmatpush1.msra.mxu0 0.0
    %226 = vmatprep.subr.mxu0 0.0
    %227 = vmatpush1.msra.mxu0 0.0
    %228 = vmatprep.subr.mxu0 0.0
    %229 = vmatpush1.msra.mxu0 %v188
    %230 = vmatprep.subr.mxu0 0.0
    %231 = vmatpush1.msra.mxu0 %v187
    %232 = vmatprep.subr.mxu0 0.0
    %233 = vmatpush2.msra.mxu0 0.0
    %234 = vmatprep.subr.mxu0 0.0
    %235 = vmatpush2.msra.mxu0 0.0
    %236 = vmatprep.subr.mxu0 0.0
    %237 = vmatpush2.msra.mxu0 0.0
    %238 = vmatprep.subr.mxu0 0.0
    %239 = vmatpush2.msra.mxu0 0.0
    %240 = vmatprep.subr.mxu0 0.0
    %241 = vmatpush2.msra.mxu0 0.0
    %242 = vmatprep.subr.mxu0 0.0
    %243 = vmatpush2.msra.mxu0 0.0
    %244 = vmatprep.subr.mxu0 0.0
    %245 = vmatpush2.msra.mxu0 0.0
    %246 = vmatprep.subr.mxu0 0.0
    %247 = vmatpush2.msra.mxu0 0.0
    %248 = vmatprep.subr.mxu0 0.0
    %249 = vmatpush2.msra.mxu0 0.0
    %250 = vmatprep.subr.mxu0 0.0
    %251 = vmatpush2.msra.mxu0 0.0
    %252 = vmatprep.subr.mxu0 0.0
    %253 = vmatpush2.msra.mxu0 0.0
    %254 = vmatprep.subr.mxu0 0.0
    %255 = vmatpush2.msra.mxu0 0.0
    %256 = vmatprep.subr.mxu0 0.0
    %257 = vmatpush2.msra.mxu0 0.0
    %258 = vmatprep.subr.mxu0 0.0
    %259 = vmatpush2.msra.mxu0 0.0
    %260 = vmatprep.subr.mxu0 0.0
    %261 = vmatpush2.msra.mxu0 0.0
    %262 = vmatprep.subr.mxu0 0.0
    %263 = vmatpush2.msra.mxu0 0.0
    %264 = vmatprep.mubr.f32.mxu0 0.0
    %265 = vmatmul.mubr.f32.gmra.mxu0 %v198
    %v266 = vpop.f32.mrf.mxu0
    %v267 = vadd.f32 %v194, %v266
    %v268 = vpop.f32.mrf.mxu0
    %269 = vdwg.mxu0
    %v270 = vmax.f32 %v267, 0.0
    %v271 = vld [vmem:[%s5] sm:$0x3]
    %v272 = vld [vmem:[%s6] sm:$0x3]
    %274 = vset.pattern.permute.xlu0 0
    %275 = vperm.xlu0 %274, %v272
    %v276 = vpop.permute.xlu0 %275
    %vm278 = vcmask 64512
    %v280 = vsel %vm278, %v271, 0
    %282 = vmatprep.subr.mxu0 0.0
    %283 = vmatpush1.msra.mxu0 0.0
    %284 = vmatprep.subr.mxu0 0.0
    %285 = vmatpush1.msra.mxu0 0.0
    %286 = vmatprep.subr.mxu0 0.0
    %287 = vmatpush1.msra.mxu0 0.0
    %288 = vmatprep.subr.mxu0 0.0
    %289 = vmatpush1.msra.mxu0 0.0
    %290 = vmatprep.subr.mxu0 0.0
    %291 = vmatpush1.msra.mxu0 0.0
    %292 = vmatprep.subr.mxu0 0.0
    %293 = vmatpush1.msra.mxu0 0.0
    %294 = vmatprep.subr.mxu0 0.0
    %295 = vmatpush1.msra.mxu0 0.0
    %296 = vmatprep.subr.mxu0 0.0
    %297 = vmatpush1.msra.mxu0 0.0
    %298 = vmatprep.subr.mxu0 0.0
    %299 = vmatpush1.msra.mxu0 0.0
    %300 = vmatprep.subr.mxu0 0.0
    %301 = vmatpush1.msra.mxu0 0.0
    %302 = vmatprep.subr.mxu0 0.0
    %303 = vmatpush1.msra.mxu0 0.0
    %304 = vmatprep.subr.mxu0 0.0
    %305 = vmatpush1.msra.mxu0 0.0
    %306 = vmatprep.subr.mxu0 0.0
    %307 = vmatpush1.msra.mxu0 0.0
    %308 = vmatprep.subr.mxu0 0.0
    %309 = vmatpush1.msra.mxu0 0.0
    %310 = vmatprep.subr.mxu0 0.0
    %311 = vmatpush1.msra.mxu0 0.0
    %312 = vmatprep.subr.mxu0 0.0
    %313 = vmatpush1.msra.mxu0 %v270
    %314 = vmatprep.subr.mxu0 0.0
    %315 = vmatpush2.msra.mxu0 0.0
    %316 = vmatprep.subr.mxu0 0.0
    %317 = vmatpush2.msra.mxu0 0.0
    %318 = vmatprep.subr.mxu0 0.0
    %319 = vmatpush2.msra.mxu0 0.0
    %320 = vmatprep.subr.mxu0 0.0
    %321 = vmatpush2.msra.mxu0 0.0
    %322 = vmatprep.subr.mxu0 0.0
    %323 = vmatpush2.msra.mxu0 0.0
    %324 = vmatprep.subr.mxu0 0.0
    %325 = vmatpush2.msra.mxu0 0.0
    %326 = vmatprep.subr.mxu0 0.0
    %327 = vmatpush2.msra.mxu0 0.0
    %328 = vmatprep.subr.mxu0 0.0
    %329 = vmatpush2.msra.mxu0 0.0
    %330 = vmatprep.subr.mxu0 0.0
    %331 = vmatpush2.msra.mxu0 0.0
    %332 = vmatprep.subr.mxu0 0.0
    %333 = vmatpush2.msra.mxu0 0.0
    %334 = vmatprep.subr.mxu0 0.0
    %335 = vmatpush2.msra.mxu0 0.0
    %336 = vmatprep.subr.mxu0 0.0
    %337 = vmatpush2.msra.mxu0 0.0
    %338 = vmatprep.subr.mxu0 0.0
    %339 = vmatpush2.msra.mxu0 0.0
    %340 = vmatprep.subr.mxu0 0.0
    %341 = vmatpush2.msra.mxu0 0.0
    %342 = vmatprep.subr.mxu0 0.0
    %343 = vmatpush2.msra.mxu0 0.0
    %344 = vmatprep.subr.mxu0 0.0
    %345 = vmatpush2.msra.mxu0 0.0
    %346 = vmatprep.mubr.f32.mxu0 0.0
    %347 = vmatmul.mubr.f32.gmra.mxu0 %v280
    %v348 = vpop.f32.mrf.mxu0
    %v349 = vadd.f32 %v276, %v348
    %v350 = vpop.f32.mrf.mxu0
    %351 = vdwg.mxu0
    %v352 = vmax.f32 %v349, 0.0
    %353 = vst [vmem:[#allocation2] sm:$0x3] %v352
    // Predicated region
    $region30: #{tpu_custom_call.1} parent=1 // pred_check
      _
    $region31: #{tpu_custom_call.1} parent=1 // pred_check_branch
      %355 = sbr.rel (0) target = $region33
    $region32: #{tpu_custom_call.1} parent=1 // pred_region
      %s357 = ssub.s32 32, 32
      %358 = vsyncadd [#allocation3], %s357
      %s360 = sshll.u32 [#allocation2], 4
      %s361 = int_to_ptr.vmem [resolvable:$true] %s360
      %363 = dma.vmem_to_hbm [thread:$0]  %s361, 32, %s7, [#allocation3]
    $region33: #{tpu_custom_call.1} parent=1 // pred_fallthru
      _
    // Predicated region
    $region34: #{tpu_custom_call.1} parent=1 // pred_check
      _
    $region35: #{tpu_custom_call.1} parent=1 // pred_check_branch
      %365 = sbr.rel (0) target = $region37
    $region36: #{tpu_custom_call.1} parent=1 // pred_region
      %366 = dma.done [#allocation3], 32
    $region37: #{tpu_custom_call.1} parent=1 // pred_fallthru
      _
    %367 = vsyncpa [#allocation3], 1

</llo_original>
